<compile_context>
chip_gen: v5e
topology: v5e:2x2
jax: 0.10.0
libtpu: 0.0.40
codegen_flags: <defaults>
</compile_context>

<pallas_src>
import functools

import jax
import jax.numpy as jnp
from jax import lax
from jax.experimental import pallas as pl
from jax.experimental.pallas import tpu as pltpu

BN_EPS = 1e-5
LANE = 128
SUBLANE = 8
ACT_VMEM_BUDGET = 16 * 1024 * 1024   # budget for the double-buffered row-tiled streams


def _round_up(x, m):
    return (x + m - 1) // m * m


def _sigmoid_stable(x):
    # sigmoid(x) = 0.5 * (tanh(x/2) + 1): overflow-free, tanh runs on the EUP.
    return 0.5 * (jnp.tanh(0.5 * x) + 1.0)


def _compiler_params(semantics, block_bytes):
    # Double-buffered pipeline estimate + margin; floor at the 32 MiB scoped default.
    # (Cap kept < physical VMEM: 128 MiB on v5e/v6e; large v7x configs would need
    #  K-tiling anyway -- see TODO above.)
    est = 2 * int(sum(block_bytes)) + (4 << 20)
    vmem = int(max(32 << 20, min(est, 96 << 20)))
    return pltpu.CompilerParams(dimension_semantics=semantics,
                                vmem_limit_bytes=vmem)


# ---------------------------------------------------------------------------
# Kernels
# ---------------------------------------------------------------------------

def _hidden_layer_kernel(*refs, inv_n, apply_affine, tile_rows, n_valid, need_mask):
    """One fused layer step on a batch tile.

        a = relu(h_prev * scale + shift)   # scale/shift folded in-kernel from the
                                           # previous layer's batch stats + gamma/beta
                                           # (skipped for the first layer)
        h = a @ W                          # MXU, f32 accumulation
        sum += colsum(h); sq += colsum(h*h)  # grid-resident f32 accumulators

    Padded batch rows are forced back to zero before the matmul so they never
    pollute this layer's batch statistics.
    """
    if apply_affine:
        (h_prev_ref, sum_in_ref, sq_in_ref, gamma_ref, beta_ref, w_ref,
         h_ref, sum_ref, sq_ref) = refs
    else:
        (h_prev_ref, w_ref, h_ref, sum_ref, sq_ref) = refs

    @pl.when(pl.program_id(0) == 0)
    def _init():
        sum_ref[...] = jnp.zeros_like(sum_ref)
        sq_ref[...] = jnp.zeros_like(sq_ref)

    if apply_affine:
        # Fold previous layer's BatchNorm (batch stats + gamma/beta) into one
        # fused scale/shift.  All f32; rsqrt goes to the EUP.
        mean = sum_in_ref[...] * inv_n
        var = jnp.maximum(sq_in_ref[...] * inv_n - mean * mean, 0.0)
        scale = gamma_ref[...] * lax.rsqrt(var + BN_EPS)
        shift = beta_ref[...] - mean * scale
        a = jnp.maximum(h_prev_ref[...].astype(jnp.float32) * scale + shift, 0.0)
        if need_mask:
            rows = pl.program_id(0) * tile_rows + lax.broadcasted_iota(
                jnp.int32, a.shape, 0)
            a = jnp.where(rows < n_valid, a, 0.0)
        a = a.astype(w_ref.dtype)
    else:
        # First layer: padded rows of x are already zero, no affine / masking.
        a = h_prev_ref[...].astype(w_ref.dtype)

    h = jnp.dot(a, w_ref[...], preferred_element_type=jnp.float32)
    h_ref[...] = h.astype(h_ref.dtype)          # bf16 inter-layer activation store
    sum_ref[...] += jnp.sum(h, axis=0, keepdims=True)
    sq_ref[...] += jnp.sum(h * h, axis=0, keepdims=True)


def _head_kernel(*refs, inv_n, apply_affine):
    """Output head: a = relu(affine(h_prev)); out = sigmoid(a . wo + bo).

    Computed transposed (A @ B^T on the MXU, flash-attention style) so the batch
    dimension lands on lanes: the output block is a lane-dense (1, tile) row
    instead of a 128x-padded (tile, 128) slab.  Only row 0 of wt is the real
    head weight (rows 1..7 are zero sublane padding).
    """
    if apply_affine:
        (h_ref, sum_in_ref, sq_in_ref, gamma_ref, beta_ref, wt_ref, b_ref,
         o_ref) = refs
        mean = sum_in_ref[...] * inv_n
        var = jnp.maximum(sq_in_ref[...] * inv_n - mean * mean, 0.0)
        scale = gamma_ref[...] * lax.rsqrt(var + BN_EPS)
        shift = beta_ref[...] - mean * scale
        a = jnp.maximum(h_ref[...].astype(jnp.float32) * scale + shift, 0.0)
    else:
        (h_ref, wt_ref, b_ref, o_ref) = refs
        a = h_ref[...].astype(jnp.float32)

    # (8, d) x (tile, d) contracting the last dims -> (8, tile)  (A @ B^T).
    logits = lax.dot_general(wt_ref[...], a, (((1,), (1,)), ((), ())),
                             preferred_element_type=jnp.float32)
    o_ref[...] = _sigmoid_stable(logits[0:1, :] + b_ref[0, 0])


# ---------------------------------------------------------------------------
# One-time parameter preparation (pad + cast; hoisted out of the forward pass)
# ---------------------------------------------------------------------------

def prepare_params(params, *, compute_dtype=jnp.bfloat16):
    """Pad / cast weights once; fcnet_forward only consumes the prepared pytree.

    params: [(w, gamma, beta)] * n_hidden + [(wo, bo)]
        w:  (d_in, d_out) f32   (nn.Linear weight, pre-transposed to (in, out))
        gamma/beta: (d_out,) or (1, d_out) f32
        wo: (d_last, 1) f32; bo: (1,) or (1, 1) f32
    compute_dtype: MXU operand + inter-layer activation dtype (bf16 default);
        all BatchNorm statistics / normalization math stays f32.
    """
    *hidden_raw, (wo, bo) = params
    compute_dtype = jnp.dtype(compute_dtype)
    # Input-feature axis only needs sublane alignment (8 f32 / 16 bf16), not a
    # 128-lane pad: cuts layer-0 input DMA ~8x for small in_features.
    sub = 16 if compute_dtype.itemsize < 4 else SUBLANE

    in_features = hidden_raw[0][0].shape[0] if hidden_raw else wo.shape[0]
    d_prev, d_prev_pad = in_features, _round_up(in_features, sub)

    hidden = []
    for w, gamma, beta in hidden_raw:
        d_out = w.shape[1]
        d_out_pad = _round_up(d_out, LANE)
        w_p = jnp.pad(w, ((0, d_prev_pad - d_prev),
                          (0, d_out_pad - d_out))).astype(compute_dtype)
        gamma_p = jnp.pad(jnp.reshape(gamma, (1, -1)).astype(jnp.float32),
                          ((0, 0), (0, d_out_pad - d_out)))
        beta_p = jnp.pad(jnp.reshape(beta, (1, -1)).astype(jnp.float32),
                         ((0, 0), (0, d_out_pad - d_out)))
        hidden.append((w_p, gamma_p, beta_p))
        d_prev, d_prev_pad = d_out, d_out_pad

    # Head weight stored transposed with 8 sublane rows (row 0 = wo^T), kept f32:
    # the head matmul is 8 x d x tile -> negligible, and f32 keeps sigmoid exact.
    wt = jnp.zeros((SUBLANE, d_prev_pad), jnp.float32)
    wt = wt.at[0, :d_prev].set(wo[:, 0].astype(jnp.float32))
    b = jnp.reshape(bo, (1, 1)).astype(jnp.float32)
    return {"hidden": hidden, "head_wt": wt, "head_b": b}


# ---------------------------------------------------------------------------
# Forward pass
# ---------------------------------------------------------------------------

def fcnet_forward(x, prepared, *, block_rows=2048):
    """Forward matching torch FCNet in training mode (batch-stat BatchNorm1d)."""
    hidden = prepared["hidden"]
    wt, b = prepared["head_wt"], prepared["head_b"]
    batch, in_features = x.shape

    compute_dtype = hidden[0][0].dtype if hidden else jnp.float32
    d_in_pad = hidden[0][0].shape[0] if hidden else wt.shape[1]

    # --- batch tile from a VMEM budget; tile is a multiple of 128 lanes so the
    #     head's (1, tile) output block stays lane-dense -----------------------
    feat_pad_max = max([d_in_pad] + [w.shape[1] for (w, _, _) in hidden])
    per_row = 4 * feat_pad_max * 4            # 2 in + 2 out buffers, f32 worst case
    cap = max(LANE, (ACT_VMEM_BUDGET // per_row) // LANE * LANE)
    tile = min(_round_up(block_rows, LANE), _round_up(batch, LANE), cap)
    n_pad = _round_up(batch, tile)
    grid = (n_pad // tile,)
    need_mask = n_pad != batch
    inv_n = 1.0 / batch

    a = jnp.pad(x, ((0, n_pad - batch), (0, d_in_pad - in_features)))
    a = a.astype(compute_dtype)

    # --- hidden layers: fused (normalize+relu) + matmul + stats per layer -----
    ssum = ssq = prev_gamma = prev_beta = None
    for li, (w_p, gamma_p, beta_p) in enumerate(hidden):
        d_prev_pad, d_out_pad = w_p.shape
        apply_affine = li > 0

        in_specs = [pl.BlockSpec((tile, d_prev_pad), lambda i: (i, 0))]
        args = [a]
        blk = [tile * d_prev_pad * a.dtype.itemsize]
        if apply_affine:
            in_specs += [pl.BlockSpec((1, d_prev_pad), lambda i: (0, 0))] * 4
            args += [ssum, ssq, prev_gamma, prev_beta]
            blk += [4 * d_prev_pad * 4]
        in_specs.append(pl.BlockSpec((d_prev_pad, d_out_pad), lambda i: (0, 0)))
        args.append(w_p)
        blk += [d_prev_pad * d_out_pad * w_p.dtype.itemsize,
                tile * d_out_pad * jnp.dtype(compute_dtype).itemsize,
                2 * d_out_pad * 4]

        kernel = functools.partial(
            _hidden_layer_kernel, inv_n=inv_n, apply_affine=apply_affine,
            tile_rows=tile, n_valid=batch, need_mask=need_mask)

        a, ssum, ssq = pl.pallas_call(
            kernel,
            grid=grid,
            in_specs=in_specs,
            out_specs=[
                pl.BlockSpec((tile, d_out_pad), lambda i: (i, 0)),
                pl.BlockSpec((1, d_out_pad), lambda i: (0, 0)),   # grid-resident sum
                pl.BlockSpec((1, d_out_pad), lambda i: (0, 0)),   # grid-resident sq
            ],
            out_shape=[
                jax.ShapeDtypeStruct((n_pad, d_out_pad), compute_dtype),
                jax.ShapeDtypeStruct((1, d_out_pad), jnp.float32),
                jax.ShapeDtypeStruct((1, d_out_pad), jnp.float32),
            ],
            compiler_params=_compiler_params(("arbitrary",), blk),
        )(*args)
        prev_gamma, prev_beta = gamma_p, beta_p

    # --- output head: fused normalize+relu+matmul^T+bias+sigmoid, lane-dense --
    d_last_pad = wt.shape[1]
    in_specs = [pl.BlockSpec((tile, d_last_pad), lambda i: (i, 0))]
    args = [a]
    blk = [tile * d_last_pad * a.dtype.itemsize]
    if hidden:
        in_specs += [pl.BlockSpec((1, d_last_pad), lambda i: (0, 0))] * 4
        args += [ssum, ssq, prev_gamma, prev_beta]
        blk += [4 * d_last_pad * 4]
    in_specs += [pl.BlockSpec((SUBLANE, d_last_pad), lambda i: (0, 0)),
                 pl.BlockSpec(memory_space=pltpu.MemorySpace.SMEM)]
    args += [wt, b]
    blk += [SUBLANE * d_last_pad * 4, tile * 4]

    head = functools.partial(_head_kernel, inv_n=inv_n, apply_affine=bool(hidden))
    out_row = pl.pallas_call(
        head,
        grid=grid,
        in_specs=in_specs,
        out_specs=pl.BlockSpec((1, tile), lambda i: (0, i)),
        out_shape=jax.ShapeDtypeStruct((1, n_pad), jnp.float32),
        compiler_params=_compiler_params(("parallel",), blk),
    )(*args)

    return out_row[0, :batch].reshape(batch, 1)


# ---------------------------------------------------------------------------
# Pure-JAX reference (mirrors the PyTorch module, training-mode BatchNorm1d)
# ---------------------------------------------------------------------------

def fcnet_reference(x, params):
    hidden_params, (wo, bo) = params[:-1], params[-1]

    def layer(h, w, gamma, beta):
        h = h @ w
        mean = jnp.mean(h, axis=0, keepdims=True)
        var = jnp.mean((h - mean) ** 2, axis=0, keepdims=True)
        h = gamma * (h - mean) / jnp.sqrt(var + BN_EPS) + beta
        return jnp.maximum(h, 0.0)

    h = x
    for w, gamma, beta in hidden_params:
        h = layer(h, w, gamma, beta)
    logits = h @ wo + bo
    return jax.nn.sigmoid(logits)


def init_params(key, in_features, layer_dims):
    """Deterministic synthetic init. Linear weights stored as (in, out)."""
    params = []
    d_in = in_features
    for d_out in layer_dims:
        key, kw, kg, kb = jax.random.split(key, 4)
        w = jax.random.normal(kw, (d_in, d_out), jnp.float32) * 0.1
        gamma = 1.0 + 0.1 * jax.random.normal(kg, (1, d_out), jnp.float32)
        beta = 0.1 * jax.random.normal(kb, (1, d_out), jnp.float32)
        params.append((w, gamma, beta))
        d_in = d_out
    key, kw, kb = jax.random.split(key, 3)
    wo = jax.random.normal(kw, (d_in, 1), jnp.float32) * 0.1
    bo = 0.1 * jax.random.normal(kb, (1, 1), jnp.float32)
    params.append((wo, bo))
    return params


if __name__ == "__main__":
    in_features = 16
    layer_dims = (32, 32)

    key = jax.random.PRNGKey(0)
    key, kx = jax.random.split(key)
    params = init_params(key, in_features, layer_dims)

    # -- exact f32 path, single tile (padded batch rows masked) --------------
    prep_f32 = prepare_params(params, compute_dtype=jnp.float32)
    batch = 8
    x = jax.random.normal(kx, (batch, in_features), jnp.float32)
    out = jax.block_until_ready(fcnet_forward(x, prep_f32))
    ref = fcnet_reference(x, params)
    assert out.shape == (batch, 1)
    assert jnp.allclose(out, ref, atol=1e-4, rtol=1e-4), \
        float(jnp.max(jnp.abs(out - ref)))

    # -- f32 path exercising the batch grid (2 tiles of 512) + row masking ---
    batch2 = 1000
    key, kx2 = jax.random.split(key)
    x2 = jax.random.normal(kx2, (batch2, in_features), jnp.float32)
    out2 = jax.block_until_ready(fcnet_forward(x2, prep_f32, block_rows=512))
    ref2 = fcnet_reference(x2, params)
    assert out2.shape == (batch2, 1)
    assert jnp.allclose(out2, ref2, atol=1e-4, rtol=1e-4), \
        float(jnp.max(jnp.abs(out2 - ref2)))

    # -- default perf path: bf16 MXU operands + bf16 inter-layer activations --
    prep_bf16 = prepare_params(params)            # compute_dtype defaults to bf16
    out_bf16 = jax.block_until_ready(fcnet_forward(x2, prep_bf16))
    assert out_bf16.shape == (batch2, 1)
    assert bool(jnp.all(jnp.isfinite(out_bf16)))
    assert jnp.allclose(out_bf16, ref2, atol=5e-2), \
        float(jnp.max(jnp.abs(out_bf16 - ref2)))

    # -- edge case: no hidden layers (head only, no BN/ReLU) ------------------
    params_head_only = init_params(jax.random.PRNGKey(1), in_features, ())
    prep_head = prepare_params(params_head_only, compute_dtype=jnp.float32)
    out3 = jax.block_until_ready(fcnet_forward(x, prep_head))
    ref3 = fcnet_reference(x, params_head_only)
    assert jnp.allclose(out3, ref3, atol=1e-4, rtol=1e-4), \
        float(jnp.max(jnp.abs(out3 - ref3)))

    print("KERNEL_OK")
</pallas_src>

<mosaic_0001>
module attributes {stable_mosaic.version = 11 : i64} {
  func.func @_hidden_layer_kernel(%arg0: i32, %arg1: memref<128x16xf32, #tpu.memory_space<vmem>>, %arg2: memref<16x128xf32, #tpu.memory_space<vmem>>, %arg3: memref<128x128xf32, #tpu.memory_space<vmem>>, %arg4: memref<1x128xf32, #tpu.memory_space<vmem>>, %arg5: memref<1x128xf32, #tpu.memory_space<vmem>>) attributes {dimension_semantics = [#tpu.dimension_semantics<arbitrary>], iteration_bounds = array<i64: 1>, scalar_prefetch = 0 : i64, scratch_operands = 0 : i64, tpu.core_type = #tpu.core_type<tc>, window_params = [{transform_indices = @transform_0, window_bounds = array<i64: 128, 16>}, {pipeline_mode = #tpu.pipeline_mode<synchronous>, transform_indices = @transform_1, window_bounds = array<i64: 16, 128>}, {transform_indices = @transform_2, window_bounds = array<i64: 128, 128>}, {pipeline_mode = #tpu.pipeline_mode<synchronous>, transform_indices = @transform_3, window_bounds = array<i64: 1, 128>}, {pipeline_mode = #tpu.pipeline_mode<synchronous>, transform_indices = @transform_4, window_bounds = array<i64: 1, 128>}]} {
    %c0_i32 = arith.constant 0 : i32
    %0 = arith.cmpi eq, %arg0, %c0_i32 : i32
    %1 = arith.extui %0 : i1 to i32
    %c0_i32_0 = arith.constant 0 : i32
    %2 = arith.cmpi ne, %1, %c0_i32_0 : i32
    scf.if %2 {
      %cst_16 = arith.constant 0.000000e+00 : f32
      %18 = vector.broadcast %cst_16 : f32 to vector<1x128xf32>
      %c0_17 = arith.constant 0 : index
      %c0_18 = arith.constant 0 : index
      %19 = vector.load %arg4[%c0_17, %c0_18] : memref<1x128xf32, #tpu.memory_space<vmem>>, vector<1x128xf32>
      tpu.vector_store %arg4[%c0_17, %c0_18], %18 {strides = array<i32>} : memref<1x128xf32, #tpu.memory_space<vmem>>, vector<1x128xf32>,
      %cst_19 = arith.constant 0.000000e+00 : f32
      %20 = vector.broadcast %cst_19 : f32 to vector<1x128xf32>
      %c0_20 = arith.constant 0 : index
      %c0_21 = arith.constant 0 : index
      %21 = vector.load %arg5[%c0_20, %c0_21] : memref<1x128xf32, #tpu.memory_space<vmem>>, vector<1x128xf32>
      tpu.vector_store %arg5[%c0_20, %c0_21], %20 {strides = array<i32>} : memref<1x128xf32, #tpu.memory_space<vmem>>, vector<1x128xf32>,
    } else {
    }
    %c0 = arith.constant 0 : index
    %c0_1 = arith.constant 0 : index
    %3 = vector.load %arg1[%c0, %c0_1] : memref<128x16xf32, #tpu.memory_space<vmem>>, vector<128x16xf32>
    %c0_2 = arith.constant 0 : index
    %c0_3 = arith.constant 0 : index
    %4 = vector.load %arg2[%c0_2, %c0_3] : memref<16x128xf32, #tpu.memory_space<vmem>>, vector<16x128xf32>
    %cst = arith.constant dense<0.000000e+00> : vector<128x128xf32>
    %5 = tpu.matmul %3, %4, %cst {dimension_numbers = #tpu.dot_dimension_numbers<[1], [0], [0], [1], [0, 0, 1, 1], [], []>} : vector<128x16xf32>, vector<16x128xf32>, vector<128x128xf32> -> vector<128x128xf32>
    %c0_4 = arith.constant 0 : index
    %c0_5 = arith.constant 0 : index
    %6 = vector.load %arg3[%c0_4, %c0_5] : memref<128x128xf32, #tpu.memory_space<vmem>>, vector<128x128xf32>
    tpu.vector_store %arg3[%c0_4, %c0_5], %5 {strides = array<i32>} : memref<128x128xf32, #tpu.memory_space<vmem>>, vector<128x128xf32>,
    %c0_6 = arith.constant 0 : index
    %c0_7 = arith.constant 0 : index
    %7 = vector.load %arg4[%c0_6, %c0_7] : memref<1x128xf32, #tpu.memory_space<vmem>>, vector<1x128xf32>
    %cst_8 = arith.constant dense<0.000000e+00> : vector<128xf32>
    %8 = vector.multi_reduction <add>, %5, %cst_8 [0] : vector<128x128xf32> to vector<128xf32>
    %9 = vector.shape_cast %8 : vector<128xf32> to vector<1x128xf32>
    %10 = arith.addf %7, %9 : vector<1x128xf32>
    %c0_9 = arith.constant 0 : index
    %c0_10 = arith.constant 0 : index
    %11 = vector.load %arg4[%c0_9, %c0_10] : memref<1x128xf32, #tpu.memory_space<vmem>>, vector<1x128xf32>
    tpu.vector_store %arg4[%c0_9, %c0_10], %10 {strides = array<i32>} : memref<1x128xf32, #tpu.memory_space<vmem>>, vector<1x128xf32>,
    %c0_11 = arith.constant 0 : index
    %c0_12 = arith.constant 0 : index
    %12 = vector.load %arg5[%c0_11, %c0_12] : memref<1x128xf32, #tpu.memory_space<vmem>>, vector<1x128xf32>
    %13 = arith.mulf %5, %5 : vector<128x128xf32>
    %cst_13 = arith.constant dense<0.000000e+00> : vector<128xf32>
    %14 = vector.multi_reduction <add>, %13, %cst_13 [0] : vector<128x128xf32> to vector<128xf32>
    %15 = vector.shape_cast %14 : vector<128xf32> to vector<1x128xf32>
    %16 = arith.addf %12, %15 : vector<1x128xf32>
    %c0_14 = arith.constant 0 : index
    %c0_15 = arith.constant 0 : index
    %17 = vector.load %arg5[%c0_14, %c0_15] : memref<1x128xf32, #tpu.memory_space<vmem>>, vector<1x128xf32>
    tpu.vector_store %arg5[%c0_14, %c0_15], %16 {strides = array<i32>} : memref<1x128xf32, #tpu.memory_space<vmem>>, vector<1x128xf32>,
    return
  }
  func.func @transform_0(%arg0: i32) -> (i32, i32) {
    %c0_i32 = arith.constant 0 : i32
    %c0_i32_0 = arith.constant 0 : i32
    return %arg0, %c0_i32 : i32, i32
  }
  func.func @transform_1(%arg0: i32) -> (i32, i32) {
    %c0_i32 = arith.constant 0 : i32
    %c0_i32_0 = arith.constant 0 : i32
    %c0_i32_1 = arith.constant 0 : i32
    return %c0_i32, %c0_i32_0 : i32, i32
  }
  func.func @transform_2(%arg0: i32) -> (i32, i32) {
    %c0_i32 = arith.constant 0 : i32
    %c0_i32_0 = arith.constant 0 : i32
    return %arg0, %c0_i32 : i32, i32
  }
  func.func @transform_3(%arg0: i32) -> (i32, i32) {
    %c0_i32 = arith.constant 0 : i32
    %c0_i32_0 = arith.constant 0 : i32
    %c0_i32_1 = arith.constant 0 : i32
    return %c0_i32, %c0_i32_0 : i32, i32
  }
  func.func @transform_4(%arg0: i32) -> (i32, i32) {
    %c0_i32 = arith.constant 0 : i32
    %c0_i32_0 = arith.constant 0 : i32
    %c0_i32_1 = arith.constant 0 : i32
    return %c0_i32, %c0_i32_0 : i32, i32
  }
}

</mosaic_0001>

<llo_original>
// kernel: tpu_custom_call.1
$region0: #{tpu_custom_call.1}
  #allocation0 [shape = 'u32[]', space=smem, size = 0x4, offset = 0x4, fixed_abs, tag = 'smem constant byte address 0x4 - core index']
  #allocation1 [shape = 'u32[72,128]{1,0:T(1,128)}', space=vmem, size = 0x9000, scoped, tag = 'internal scratch']
  %s0 = inlined_call_operand.vmem [shape: f32[128,16], index: 0, kind: input, shape index: {}]
  %s1 = inlined_call_operand.vmem [shape: f32[16,128], index: 1, kind: input, shape index: {}]
  %s2 = inlined_call_operand.hbm [shape: f32[128,128], index: 2, kind: output, shape index: {0}]
  %s3 = inlined_call_operand.hbm [shape: f32[1,128], index: 3, kind: output, shape index: {1}]
  %s4 = inlined_call_operand.hbm [shape: f32[1,128], index: 4, kind: output, shape index: {2}]
  %5 = xla_tuple %s2, %s3, %s4
  %s6 = sld [smem:[#allocation0]]
  $region38: #{tpu_custom_call.1} parent=0
    _
  %s8 = ssub.s32 1, %s6
  %s9 = scalar_select 0, %s8, %s6
  $region1: #{tpu_custom_call.1} parent=0
    #allocation2 [shape = 'u8[65536]{0}', space=vmem, size = 0x10000, scoped, tag = 'output window, operand 0, single buffered']
    #allocation3 [shape = 's32[1]{0}', space=sflag, size = 0x4, scoped, tag = 'scoped memory for tpu_custom_call.1']
    #allocation4 [shape = 'u8[512]{0}', space=vmem, size = 0x400, scoped, tag = 'output window, operand 1, single buffered']
    #allocation5 [shape = 's32[1]{0}', space=sflag, size = 0x4, scoped, tag = 'scoped memory for tpu_custom_call.1']
    #allocation6 [shape = 'u8[512]{0}', space=vmem, size = 0x400, scoped, tag = 'output window, operand 2, single buffered']
    %10 = vsyncpa [#allocation3], 0
    %11 = vsyncpa [#allocation5], 0
    // Predicated region
    $region2: #{tpu_custom_call.1} parent=1 // pred_check
      _
    $region3: #{tpu_custom_call.1} parent=1 // pred_check_branch
      %13 = sbr.rel (0) target = $region5
    $region4: #{tpu_custom_call.1} parent=1 // pred_region
      _
    $region5: #{tpu_custom_call.1} parent=1 // pred_fallthru
      _
    // Predicated region
    $region6: #{tpu_custom_call.1} parent=1 // pred_check
      _
    $region7: #{tpu_custom_call.1} parent=1 // pred_check_branch
      %15 = sbr.rel (0) target = $region9
    $region8: #{tpu_custom_call.1} parent=1 // pred_region
      _
    $region9: #{tpu_custom_call.1} parent=1 // pred_fallthru
      _
    %p16 = scmp.eq.s32.totalorder 0, 0
    // Predicated region
    $region10: #{tpu_custom_call.1} parent=1 // pred_check
      %p17 = pneg %p16
    $region11: #{tpu_custom_call.1} parent=1 // pred_check_branch
      %19 = sbr.rel (%p17) target = $region13
    $region12: #{tpu_custom_call.1} parent=1 // pred_region
      %20 = vst [vmem:[#allocation4] sm:$0x1] 0.0
      %21 = vst [vmem:[#allocation6] sm:$0x1] 0.0
    $region13: #{tpu_custom_call.1} parent=1 // pred_fallthru
      _
    %v22 = vld [vmem:[%s0] sm:$0xff]
    %v23 = vld [vmem:[%s0 + $0x8] sm:$0xff]
    %v24 = vld [vmem:[%s0 + $0x10] sm:$0xff]
    %v25 = vld [vmem:[%s0 + $0x18] sm:$0xff]
    %v26 = vld [vmem:[%s0 + $0x20] sm:$0xff]
    %v27 = vld [vmem:[%s0 + $0x28] sm:$0xff]
    %v28 = vld [vmem:[%s0 + $0x30] sm:$0xff]
    %v29 = vld [vmem:[%s0 + $0x38] sm:$0xff]
    %v30 = vld [vmem:[%s0 + $0x40] sm:$0xff]
    %v31 = vld [vmem:[%s0 + $0x48] sm:$0xff]
    %v32 = vld [vmem:[%s0 + $0x50] sm:$0xff]
    %v33 = vld [vmem:[%s0 + $0x58] sm:$0xff]
    %v34 = vld [vmem:[%s0 + $0x60] sm:$0xff]
    %v35 = vld [vmem:[%s0 + $0x68] sm:$0xff]
    %v36 = vld [vmem:[%s0 + $0x70] sm:$0xff]
    %v37 = vld [vmem:[%s0 + $0x78] sm:$0xff]
    %v38 = vld [vmem:[%s1] sm:$0xff]
    %v39 = vld [vmem:[%s1 + $0x8] sm:$0xff]
    %vm40 = vcmask 130048
    %v42 = vsel %vm40, %v22, 0
    %v45 = vsel %vm40, %v23, 0
    %v48 = vsel %vm40, %v24, 0
    %v51 = vsel %vm40, %v25, 0
    %v54 = vsel %vm40, %v26, 0
    %v57 = vsel %vm40, %v27, 0
    %v60 = vsel %vm40, %v28, 0
    %v63 = vsel %vm40, %v29, 0
    %v66 = vsel %vm40, %v30, 0
    %v69 = vsel %vm40, %v31, 0
    %v72 = vsel %vm40, %v32, 0
    %v75 = vsel %vm40, %v33, 0
    %v78 = vsel %vm40, %v34, 0
    %v81 = vsel %vm40, %v35, 0
    %v84 = vsel %vm40, %v36, 0
    %v87 = vsel %vm40, %v37, 0
    %89 = vmatpush.msra.mxu0 0.0
    %90 = vmatpush.msra.mxu0 0.0
    %91 = vmatpush.msra.mxu0 0.0
    %92 = vmatpush.msra.mxu0 0.0
    %93 = vmatpush.msra.mxu0 0.0
    %94 = vmatpush.msra.mxu0 0.0
    %95 = vmatpush.msra.mxu0 0.0
    %96 = vmatpush.msra.mxu0 0.0
    %97 = vmatpush.msra.mxu0 0.0
    %98 = vmatpush.msra.mxu0 0.0
    %99 = vmatpush.msra.mxu0 0.0
    %100 = vmatpush.msra.mxu0 0.0
    %101 = vmatpush.msra.mxu0 0.0
    %102 = vmatpush.msra.mxu0 0.0
    %103 = vmatpush.msra.mxu0 %v39
    %104 = vmatpush.msra.mxu0 %v38
    %105 = vmatmul.f32.gmra.mxu0 %v42
    %v106 = vpop.f32.mrf.mxu0
    %v107 = vadd.f32 0.0, %v106
    %108 = vmatmul.f32.gmra.mxu0 %v45
    %v109 = vpop.f32.mrf.mxu0
    %v110 = vadd.f32 0.0, %v109
    %111 = vmatmul.f32.gmra.mxu0 %v48
    %v112 = vpop.f32.mrf.mxu0
    %v113 = vadd.f32 0.0, %v112
    %114 = vmatmul.f32.gmra.mxu0 %v51
    %v115 = vpop.f32.mrf.mxu0
    %v116 = vadd.f32 0.0, %v115
    %117 = vmatmul.f32.gmra.mxu0 %v54
    %v118 = vpop.f32.mrf.mxu0
    %v119 = vadd.f32 0.0, %v118
    %120 = vmatmul.f32.gmra.mxu0 %v57
    %v121 = vpop.f32.mrf.mxu0
    %v122 = vadd.f32 0.0, %v121
    %123 = vmatmul.f32.gmra.mxu0 %v60
    %v124 = vpop.f32.mrf.mxu0
    %v125 = vadd.f32 0.0, %v124
    %126 = vmatmul.f32.gmra.mxu0 %v63
    %v127 = vpop.f32.mrf.mxu0
    %v128 = vadd.f32 0.0, %v127
    %129 = vmatmul.f32.gmra.mxu0 %v66
    %v130 = vpop.f32.mrf.mxu0
    %v131 = vadd.f32 0.0, %v130
    %132 = vmatmul.f32.gmra.mxu0 %v69
    %v133 = vpop.f32.mrf.mxu0
    %v134 = vadd.f32 0.0, %v133
    %135 = vmatmul.f32.gmra.mxu0 %v72
    %v136 = vpop.f32.mrf.mxu0
    %v137 = vadd.f32 0.0, %v136
    %138 = vmatmul.f32.gmra.mxu0 %v75
    %v139 = vpop.f32.mrf.mxu0
    %v140 = vadd.f32 0.0, %v139
    %141 = vmatmul.f32.gmra.mxu0 %v78
    %v142 = vpop.f32.mrf.mxu0
    %v143 = vadd.f32 0.0, %v142
    %144 = vmatmul.f32.gmra.mxu0 %v81
    %v145 = vpop.f32.mrf.mxu0
    %v146 = vadd.f32 0.0, %v145
    %147 = vmatmul.f32.gmra.mxu0 %v84
    %v148 = vpop.f32.mrf.mxu0
    %v149 = vadd.f32 0.0, %v148
    %150 = vmatmul.f32.gmra.mxu0 %v87
    %v151 = vpop.f32.mrf.mxu0
    %v152 = vadd.f32 0.0, %v151
    %153 = vdwg.mxu0
    %154 = vst [vmem:[#allocation2] sm:$0xff] %v107
    %155 = vst [vmem:[#allocation2 + $0x8] sm:$0xff] %v110
    %156 = vst [vmem:[#allocation2 + $0x10] sm:$0xff] %v113
    %157 = vst [vmem:[#allocation2 + $0x18] sm:$0xff] %v116
    %158 = vst [vmem:[#allocation2 + $0x20] sm:$0xff] %v119
    %159 = vst [vmem:[#allocation2 + $0x28] sm:$0xff] %v122
    %160 = vst [vmem:[#allocation2 + $0x30] sm:$0xff] %v125
    %161 = vst [vmem:[#allocation2 + $0x38] sm:$0xff] %v128
    %162 = vst [vmem:[#allocation2 + $0x40] sm:$0xff] %v131
    %163 = vst [vmem:[#allocation2 + $0x48] sm:$0xff] %v134
    %164 = vst [vmem:[#allocation2 + $0x50] sm:$0xff] %v137
    %165 = vst [vmem:[#allocation2 + $0x58] sm:$0xff] %v140
    %166 = vst [vmem:[#allocation2 + $0x60] sm:$0xff] %v143
    %167 = vst [vmem:[#allocation2 + $0x68] sm:$0xff] %v146
    %168 = vst [vmem:[#allocation2 + $0x70] sm:$0xff] %v149
    %169 = vst [vmem:[#allocation2 + $0x78] sm:$0xff] %v152
    %v170 = vld [vmem:[#allocation4] sm:$0x1]
    %v171 = vadd.f32 %v107, %v110
    %v172 = vadd.f32 %v171, %v113
    %v173 = vadd.f32 %v172, %v116
    %v174 = vadd.f32 %v173, %v119
    %v175 = vadd.f32 %v174, %v122
    %v176 = vadd.f32 %v175, %v125
    %v177 = vadd.f32 %v176, %v128
    %v178 = vadd.f32 %v177, %v131
    %v179 = vadd.f32 %v178, %v134
    %v180 = vadd.f32 %v179, %v137
    %v181 = vadd.f32 %v180, %v140
    %v182 = vadd.f32 %v181, %v143
    %v183 = vadd.f32 %v182, %v146
    %v184 = vadd.f32 %v183, %v149
    %v185 = vadd.f32 %v184, %v152
    %v186 = vrot.slane %v185, 4
    %v187 = vadd.f32 %v185, %v186
    %v188 = vrot.slane %v187, 2
    %v189 = vadd.f32 %v187, %v188
    %v190 = vrot.slane %v189, 1
    %v191 = vadd.f32 %v189, %v190
    %v192 = vadd.f32 %v170, %v191
    %193 = vst [vmem:[#allocation4] sm:$0x1] %v192
    %v194 = vld [vmem:[#allocation6] sm:$0x1]
    %v195 = vmul.f32 %v107, %v107
    %v196 = vmul.f32 %v110, %v110
    %v197 = vmul.f32 %v113, %v113
    %v198 = vmul.f32 %v116, %v116
    %v199 = vmul.f32 %v119, %v119
    %v200 = vmul.f32 %v122, %v122
    %v201 = vmul.f32 %v125, %v125
    %v202 = vmul.f32 %v128, %v128
    %v203 = vmul.f32 %v131, %v131
    %v204 = vmul.f32 %v134, %v134
    %v205 = vmul.f32 %v137, %v137
    %v206 = vmul.f32 %v140, %v140
    %v207 = vmul.f32 %v143, %v143
    %v208 = vmul.f32 %v146, %v146
    %v209 = vmul.f32 %v149, %v149
    %v210 = vmul.f32 %v152, %v152
    %v211 = vadd.f32 %v195, %v196
    %v212 = vadd.f32 %v211, %v197
    %v213 = vadd.f32 %v212, %v198
    %v214 = vadd.f32 %v213, %v199
    %v215 = vadd.f32 %v214, %v200
    %v216 = vadd.f32 %v215, %v201
    %v217 = vadd.f32 %v216, %v202
    %v218 = vadd.f32 %v217, %v203
    %v219 = vadd.f32 %v218, %v204
    %v220 = vadd.f32 %v219, %v205
    %v221 = vadd.f32 %v220, %v206
    %v222 = vadd.f32 %v221, %v207
    %v223 = vadd.f32 %v222, %v208
    %v224 = vadd.f32 %v223, %v209
    %v225 = vadd.f32 %v224, %v210
    %v226 = vrot.slane %v225, 4
    %v227 = vadd.f32 %v225, %v226
    %v228 = vrot.slane %v227, 2
    %v229 = vadd.f32 %v227, %v228
    %v230 = vrot.slane %v229, 1
    %v231 = vadd.f32 %v229, %v230
    %v232 = vadd.f32 %v194, %v231
    %233 = vst [vmem:[#allocation6] sm:$0x1] %v232
    // Predicated region
    $region14: #{tpu_custom_call.1} parent=1 // pred_check
      _
    $region15: #{tpu_custom_call.1} parent=1 // pred_check_branch
      %235 = sbr.rel (0) target = $region17
    $region16: #{tpu_custom_call.1} parent=1 // pred_region
      %237 = vsyncadd [#allocation3], 0
      %s238 = sshll.u32 [#allocation2], 4
      %s239 = int_to_ptr.vmem [resolvable:$true] %s238
      %s240 = sshll.u32 %s2, 4
      %s241 = int_to_ptr.hbm [resolvable:$true] %s240
      %246 = dma.vmem_to_hbm [thread:$0]  %s239, 2048, %s241, [#allocation3], 128, 128, 8
    $region17: #{tpu_custom_call.1} parent=1 // pred_fallthru
      _
    // Predicated region
    $region18: #{tpu_custom_call.1} parent=1 // pred_check
      _
    $region19: #{tpu_custom_call.1} parent=1 // pred_check_branch
      %248 = sbr.rel (0) target = $region21
    $region20: #{tpu_custom_call.1} parent=1 // pred_region
      %250 = vsyncadd [#allocation5], 0
      %s252 = sshll.u32 [#allocation4], 4
      %s253 = int_to_ptr.vmem [resolvable:$true] %s252
      %s254 = sshll.u32 %s3, 4
      %s255 = int_to_ptr.hbm [resolvable:$true] %s254
      %257 = dma.vmem_to_hbm [thread:$0]  %s253, 16, %s255, [#allocation5]
    $region21: #{tpu_custom_call.1} parent=1 // pred_fallthru
      _
    // Predicated region
    $region22: #{tpu_custom_call.1} parent=1 // pred_check
      _
    $region23: #{tpu_custom_call.1} parent=1 // pred_check_branch
      %259 = sbr.rel (0) target = $region25
    $region24: #{tpu_custom_call.1} parent=1 // pred_region
      %261 = vsyncadd [#allocation5], 0
      %s263 = sshll.u32 [#allocation6], 4
      %s264 = int_to_ptr.vmem [resolvable:$true] %s263
      %s265 = sshll.u32 %s4, 4
      %s266 = int_to_ptr.hbm [resolvable:$true] %s265
      %268 = dma.vmem_to_hbm [thread:$0]  %s264, 16, %s266, [#allocation5]
    $region25: #{tpu_custom_call.1} parent=1 // pred_fallthru
      _
    // Predicated region
    $region26: #{tpu_custom_call.1} parent=1 // pred_check
      _
    $region27: #{tpu_custom_call.1} parent=1 // pred_check_branch
      %270 = sbr.rel (0) target = $region29
    $region28: #{tpu_custom_call.1} parent=1 // pred_region
      %272 = dma.done [#allocation3], 2048
    $region29: #{tpu_custom_call.1} parent=1 // pred_fallthru
      _
    // Predicated region
    $region30: #{tpu_custom_call.1} parent=1 // pred_check
      _
    $region31: #{tpu_custom_call.1} parent=1 // pred_check_branch
      %274 = sbr.rel (0) target = $region33
    $region32: #{tpu_custom_call.1} parent=1 // pred_region
      %276 = dma.done [#allocation5], 16
    $region33: #{tpu_custom_call.1} parent=1 // pred_fallthru
      _
    // Predicated region
    $region34: #{tpu_custom_call.1} parent=1 // pred_check
      _
    $region35: #{tpu_custom_call.1} parent=1 // pred_check_branch
      %278 = sbr.rel (0) target = $region37
    $region36: #{tpu_custom_call.1} parent=1 // pred_region
      %280 = dma.done [#allocation5], 16
    $region37: #{tpu_custom_call.1} parent=1 // pred_fallthru
      _
    %281 = vsyncpa [#allocation3], 1
    %282 = vsyncpa [#allocation5], 1

</llo_original>
